<compile_context>
chip_gen: v7x
topology: tpu7x:2x2x1
jax: 0.10.0
libtpu: 0.0.40
codegen_flags: <defaults>
</compile_context>

<pallas_src>
import functools

import jax
import jax.numpy as jnp
from jax.experimental import pallas as pl
from jax.experimental.pallas import tpu as pltpu


def _scm_encoder_kernel(x_ref, w1_ref, b1_ref, w2_ref, b2_ref, w3_ref, b3_ref,
                        o_ref, *, compute_dtype):
    # Weights/biases are whole-array blocks with constant index_maps -> resident.
    w1 = w1_ref[...].astype(compute_dtype)
    w2 = w2_ref[...].astype(compute_dtype)
    w3 = w3_ref[...].astype(compute_dtype)
    b1 = b1_ref[...].astype(jnp.float32)
    b2 = b2_ref[...].astype(jnp.float32)
    b3 = b3_ref[...].astype(jnp.float32)

    bb = x_ref.shape[0]
    for b in range(bb):  # static unroll; bb <= 8
        x = x_ref[b].astype(compute_dtype)                     # (C_in, P)

        # conv1 (1x1) + SiLU: MXU matmul, f32 accumulate, f32 activation math.
        h1 = jnp.dot(w1, x, preferred_element_type=jnp.float32) + b1
        h1 = h1 * jax.nn.sigmoid(h1)

        # conv2 (1x1) + SiLU
        h2 = jnp.dot(w2, h1.astype(compute_dtype),
                     preferred_element_type=jnp.float32) + b2
        h2 = h2 * jax.nn.sigmoid(h2)

        # conv3 (1x1), no activation
        h3 = jnp.dot(w3, h2.astype(compute_dtype),
                     preferred_element_type=jnp.float32) + b3

        o_ref[b] = h3.astype(o_ref.dtype)                      # (C_out, P) lane-dense store


def _choose_batch_block(B, tp, tile_pixels):
    """Fold batches per grid step for small images, keeping clean divisibility
    and >=2 grid steps when B allows (v7x has 2 TensorCores)."""
    if B <= 1:
        return 1
    target = min(max(1, tile_pixels // tp), 8, -(-B // 2))
    for bb in range(target, 0, -1):
        if B % bb == 0:
            return bb
    return 1


def scm_encoder_forward(x_nchw, params, *, tile_pixels=8192,
                        out_dtype=jnp.bfloat16, compute_dtype=jnp.bfloat16):
    """x_nchw: (B, C_in, H, W). Returns (B, C_out, H, W) in out_dtype.

    out_dtype defaults to bf16 (output HBM traffic dominates); set f32 for
    bit-tighter results. MXU accumulation is always f32.
    """
    w1, b1, w2, b2, w3, b3 = params
    B, C_in, H, W = x_nchw.shape
    C_out = w3.shape[0]
    HW = H * W

    # Pixel tile: multiple of 128 lanes, capped at the (128-rounded) image size.
    hw_128 = -(-HW // 128) * 128
    tp = max(128, min(-(-tile_pixels // 128) * 128, hw_128))
    hw_tiles = pl.cdiv(HW, tp)            # ragged last block handled by Pallas

    bb = _choose_batch_block(B, tp, tile_pixels) if hw_tiles == 1 else 1
    grid = (pl.cdiv(B, bb), hw_tiles)

    def x_map(g, p):
        return (g, 0, p)

    def full_map(g, p):
        return (0, 0)

    c1, c2 = w1.shape[0], w2.shape[0]
    in_isz = jnp.dtype(x_nchw.dtype).itemsize
    out_isz = jnp.dtype(out_dtype).itemsize
    # Double-buffered in/out tiles + f32 intermediates + headroom.
    est = (2 * bb * C_in * tp * in_isz
           + 2 * bb * C_out * tp * out_isz
           + (c1 + c2 + C_out) * tp * 4
           + (4 << 20))
    vmem_limit = min(max(32 << 20, int(1.25 * est)), 60 << 20)

    kernel = functools.partial(_scm_encoder_kernel, compute_dtype=compute_dtype)

    out_rows = pl.pallas_call(
        kernel,
        out_shape=jax.ShapeDtypeStruct((B, C_out, HW), out_dtype),
        grid_spec=pltpu.PrefetchScalarGridSpec(
            num_scalar_prefetch=0,
            grid=grid,
            in_specs=[
                pl.BlockSpec((bb, C_in, tp), x_map),   # x tile (NCHW direct)
                pl.BlockSpec(w1.shape, full_map),      # W1 (c1, C_in)
                pl.BlockSpec(b1.shape, full_map),      # b1 (c1, 1)
                pl.BlockSpec(w2.shape, full_map),      # W2 (c2, c1)
                pl.BlockSpec(b2.shape, full_map),      # b2 (c2, 1)
                pl.BlockSpec(w3.shape, full_map),      # W3 (C_out, c2)
                pl.BlockSpec(b3.shape, full_map),      # b3 (C_out, 1)
            ],
            out_specs=pl.BlockSpec((bb, C_out, tp), x_map),
        ),
        compiler_params=pltpu.CompilerParams(
            dimension_semantics=("parallel", "parallel"),
            vmem_limit_bytes=vmem_limit,
        ),
    )(x_nchw.reshape(B, C_in, HW), w1, b1, w2, b2, w3, b3)

    # (B, C_out, H*W) -> NCHW: free reshape, no transpose, no slicing.
    return out_rows.reshape(B, C_out, H, W)


def init_params(key, input_nc, output_nc=128, dtype=jnp.float32):
    """Deterministic synthetic params in PyTorch Conv2d layout:
    weight (c_out, c_in) (1x1 spatial dims squeezed), bias (c_out, 1)."""
    c1 = input_nc // 2
    c2 = input_nc // 4
    ks = jax.random.split(key, 6)
    scale = 0.1
    w1 = scale * jax.random.normal(ks[0], (c1, input_nc), dtype)
    b1 = scale * jax.random.normal(ks[1], (c1, 1), dtype)
    w2 = scale * jax.random.normal(ks[2], (c2, c1), dtype)
    b2 = scale * jax.random.normal(ks[3], (c2, 1), dtype)
    w3 = scale * jax.random.normal(ks[4], (output_nc, c2), dtype)
    b3 = scale * jax.random.normal(ks[5], (output_nc, 1), dtype)
    return (w1, b1, w2, b2, w3, b3)


def _reference_forward(x_nchw, params):
    """Plain-JAX f32 reference matching the PyTorch forward semantics."""
    w1, b1, w2, b2, w3, b3 = params
    B, C_in, H, W = x_nchw.shape
    x = x_nchw.reshape(B, C_in, H * W).astype(jnp.float32)
    h = jax.nn.silu(jnp.einsum('oi,bip->bop', w1, x) + b1)
    h = jax.nn.silu(jnp.einsum('oi,bip->bop', w2, h) + b2)
    h = jnp.einsum('oi,bip->bop', w3, h) + b3
    return h.reshape(B, -1, H, W)


if __name__ == "__main__":
    key = jax.random.PRNGKey(0)
    k_x, k_p, k_x2 = jax.random.split(key, 3)

    B, input_nc, H, W = 2, 16, 16, 16
    output_nc = 128

    x = jax.random.normal(k_x, (B, input_nc, H, W), jnp.float32)
    params = init_params(k_p, input_nc, output_nc)
    ref = _reference_forward(x, params)

    # 1) f32-compute / f32-out path: tight tolerance (verifies kernel wiring,
    #    tiling and ragged-block handling).
    out_f32 = scm_encoder_forward(x, params, out_dtype=jnp.float32,
                                  compute_dtype=jnp.float32)
    out_f32 = jax.block_until_ready(out_f32)
    assert out_f32.shape == (B, output_nc, H, W), out_f32.shape
    assert jnp.allclose(out_f32, ref, atol=1e-4, rtol=1e-4), "f32 path mismatch"

    # 2) Default (bf16 operands + bf16 output) path: looser tolerance.
    out_bf16 = scm_encoder_forward(x, params)
    out_bf16 = jax.block_until_ready(out_bf16)
    assert out_bf16.dtype == jnp.bfloat16
    assert jnp.allclose(out_bf16.astype(jnp.float32), ref,
                        atol=3e-2, rtol=3e-2), "bf16 path mismatch"

    # 3) Larger batch of small images: exercises the batch-folding path
    #    (several images per grid step).
    x2 = jax.random.normal(k_x2, (8, input_nc, H, W), jnp.float32)
    ref2 = _reference_forward(x2, params)
    out2 = scm_encoder_forward(x2, params)
    out2 = jax.block_until_ready(out2)
    assert out2.shape == (8, output_nc, H, W), out2.shape
    assert jnp.allclose(out2.astype(jnp.float32), ref2,
                        atol=3e-2, rtol=3e-2), "batched path mismatch"

    print("KERNEL_OK")
</pallas_src>

<mosaic_0001>
module attributes {stable_mosaic.version = 11 : i64} {
  func.func @_scm_encoder_kernel(%arg0: i32, %arg1: i32, %arg2: memref<1x16x256xf32, #tpu.memory_space<vmem>>, %arg3: memref<8x16xf32, #tpu.memory_space<vmem>>, %arg4: memref<8x1xf32, #tpu.memory_space<vmem>>, %arg5: memref<4x8xf32, #tpu.memory_space<vmem>>, %arg6: memref<4x1xf32, #tpu.memory_space<vmem>>, %arg7: memref<128x4xf32, #tpu.memory_space<vmem>>, %arg8: memref<128x1xf32, #tpu.memory_space<vmem>>, %arg9: memref<1x128x256xf32, #tpu.memory_space<vmem>>) attributes {dimension_semantics = [#tpu.dimension_semantics<parallel>, #tpu.dimension_semantics<parallel>], iteration_bounds = array<i64: 2, 1>, scalar_prefetch = 0 : i64, scratch_operands = 0 : i64, tpu.core_type = #tpu.core_type<tc>, window_params = [{transform_indices = @transform_0, window_bounds = array<i64: 1, 16, 256>}, {pipeline_mode = #tpu.pipeline_mode<synchronous>, transform_indices = @transform_1, window_bounds = array<i64: 8, 16>}, {pipeline_mode = #tpu.pipeline_mode<synchronous>, transform_indices = @transform_2, window_bounds = array<i64: 8, 1>}, {pipeline_mode = #tpu.pipeline_mode<synchronous>, transform_indices = @transform_3, window_bounds = array<i64: 4, 8>}, {pipeline_mode = #tpu.pipeline_mode<synchronous>, transform_indices = @transform_4, window_bounds = array<i64: 4, 1>}, {pipeline_mode = #tpu.pipeline_mode<synchronous>, transform_indices = @transform_5, window_bounds = array<i64: 128, 4>}, {pipeline_mode = #tpu.pipeline_mode<synchronous>, transform_indices = @transform_6, window_bounds = array<i64: 128, 1>}, {transform_indices = @transform_7, window_bounds = array<i64: 1, 128, 256>}]} {
    %c0 = arith.constant 0 : index
    %c0_0 = arith.constant 0 : index
    %0 = vector.load %arg3[%c0, %c0_0] : memref<8x16xf32, #tpu.memory_space<vmem>>, vector<8x16xf32>
    %c0_1 = arith.constant 0 : index
    %c0_2 = arith.constant 0 : index
    %1 = vector.load %arg5[%c0_1, %c0_2] : memref<4x8xf32, #tpu.memory_space<vmem>>, vector<4x8xf32>
    %c0_3 = arith.constant 0 : index
    %c0_4 = arith.constant 0 : index
    %2 = vector.load %arg7[%c0_3, %c0_4] : memref<128x4xf32, #tpu.memory_space<vmem>>, vector<128x4xf32>
    %c0_5 = arith.constant 0 : index
    %c0_6 = arith.constant 0 : index
    %3 = vector.load %arg4[%c0_5, %c0_6] : memref<8x1xf32, #tpu.memory_space<vmem>>, vector<8x1xf32>
    %c0_7 = arith.constant 0 : index
    %c0_8 = arith.constant 0 : index
    %4 = vector.load %arg6[%c0_7, %c0_8] : memref<4x1xf32, #tpu.memory_space<vmem>>, vector<4x1xf32>
    %c0_9 = arith.constant 0 : index
    %c0_10 = arith.constant 0 : index
    %5 = vector.load %arg8[%c0_9, %c0_10] : memref<128x1xf32, #tpu.memory_space<vmem>>, vector<128x1xf32>
    %c0_11 = arith.constant 0 : index
    %c0_12 = arith.constant 0 : index
    %c0_13 = arith.constant 0 : index
    %6 = vector.load %arg2[%c0_11, %c0_12, %c0_13] : memref<1x16x256xf32, #tpu.memory_space<vmem>>, vector<1x16x256xf32>
    %7 = vector.shape_cast %6 : vector<1x16x256xf32> to vector<16x256xf32>
    %cst = arith.constant dense<0.000000e+00> : vector<8x256xf32>
    %8 = tpu.matmul %0, %7, %cst {dimension_numbers = #tpu.dot_dimension_numbers<[1], [0], [0], [1], [0, 0, 1, 1], [], []>} : vector<8x16xf32>, vector<16x256xf32>, vector<8x256xf32> -> vector<8x256xf32>
    %9 = vector.broadcast %3 : vector<8x1xf32> to vector<8x256xf32>
    %10 = arith.addf %8, %9 : vector<8x256xf32>
    %11 = arith.negf %10 : vector<8x256xf32>
    %12 = math.exp %11 : vector<8x256xf32>
    %cst_14 = arith.constant 1.000000e+00 : f32
    %13 = vector.broadcast %cst_14 : f32 to vector<8x256xf32>
    %14 = arith.addf %13, %12 : vector<8x256xf32>
    %15 = arith.divf %13, %14 : vector<8x256xf32>
    %16 = arith.mulf %10, %15 : vector<8x256xf32>
    %cst_15 = arith.constant dense<0.000000e+00> : vector<4x256xf32>
    %17 = tpu.matmul %1, %16, %cst_15 {dimension_numbers = #tpu.dot_dimension_numbers<[1], [0], [0], [1], [0, 0, 1, 1], [], []>} : vector<4x8xf32>, vector<8x256xf32>, vector<4x256xf32> -> vector<4x256xf32>
    %18 = vector.broadcast %4 : vector<4x1xf32> to vector<4x256xf32>
    %19 = arith.addf %17, %18 : vector<4x256xf32>
    %20 = arith.negf %19 : vector<4x256xf32>
    %21 = math.exp %20 : vector<4x256xf32>
    %cst_16 = arith.constant 1.000000e+00 : f32
    %22 = vector.broadcast %cst_16 : f32 to vector<4x256xf32>
    %23 = arith.addf %22, %21 : vector<4x256xf32>
    %24 = arith.divf %22, %23 : vector<4x256xf32>
    %25 = arith.mulf %19, %24 : vector<4x256xf32>
    %cst_17 = arith.constant dense<0.000000e+00> : vector<128x256xf32>
    %26 = tpu.matmul %2, %25, %cst_17 {dimension_numbers = #tpu.dot_dimension_numbers<[1], [0], [0], [1], [0, 0, 1, 1], [], []>} : vector<128x4xf32>, vector<4x256xf32>, vector<128x256xf32> -> vector<128x256xf32>
    %27 = vector.broadcast %5 : vector<128x1xf32> to vector<128x256xf32>
    %28 = arith.addf %26, %27 : vector<128x256xf32>
    %c0_18 = arith.constant 0 : index
    %c0_19 = arith.constant 0 : index
    %c0_20 = arith.constant 0 : index
    %29 = vector.load %arg9[%c0_18, %c0_19, %c0_20] : memref<1x128x256xf32, #tpu.memory_space<vmem>>, vector<1x128x256xf32>
    %30 = vector.shape_cast %29 : vector<1x128x256xf32> to vector<128x256xf32>
    %31 = vector.shape_cast %28 : vector<128x256xf32> to vector<1x128x256xf32>
    tpu.vector_store %arg9[%c0_18, %c0_19, %c0_20], %31 {strides = array<i32>} : memref<1x128x256xf32, #tpu.memory_space<vmem>>, vector<1x128x256xf32>,
    return
  }
  func.func @transform_0(%arg0: i32, %arg1: i32) -> (i32, i32, i32) {
    %c0_i32 = arith.constant 0 : i32
    %c0_i32_0 = arith.constant 0 : i32
    return %arg0, %c0_i32, %arg1 : i32, i32, i32
  }
  func.func @transform_1(%arg0: i32, %arg1: i32) -> (i32, i32) {
    %c0_i32 = arith.constant 0 : i32
    %c0_i32_0 = arith.constant 0 : i32
    %c0_i32_1 = arith.constant 0 : i32
    return %c0_i32, %c0_i32_0 : i32, i32
  }
  func.func @transform_2(%arg0: i32, %arg1: i32) -> (i32, i32) {
    %c0_i32 = arith.constant 0 : i32
    %c0_i32_0 = arith.constant 0 : i32
    %c0_i32_1 = arith.constant 0 : i32
    return %c0_i32, %c0_i32_0 : i32, i32
  }
  func.func @transform_3(%arg0: i32, %arg1: i32) -> (i32, i32) {
    %c0_i32 = arith.constant 0 : i32
    %c0_i32_0 = arith.constant 0 : i32
    %c0_i32_1 = arith.constant 0 : i32
    return %c0_i32, %c0_i32_0 : i32, i32
  }
  func.func @transform_4(%arg0: i32, %arg1: i32) -> (i32, i32) {
    %c0_i32 = arith.constant 0 : i32
    %c0_i32_0 = arith.constant 0 : i32
    %c0_i32_1 = arith.constant 0 : i32
    return %c0_i32, %c0_i32_0 : i32, i32
  }
  func.func @transform_5(%arg0: i32, %arg1: i32) -> (i32, i32) {
    %c0_i32 = arith.constant 0 : i32
    %c0_i32_0 = arith.constant 0 : i32
    %c0_i32_1 = arith.constant 0 : i32
    return %c0_i32, %c0_i32_0 : i32, i32
  }
  func.func @transform_6(%arg0: i32, %arg1: i32) -> (i32, i32) {
    %c0_i32 = arith.constant 0 : i32
    %c0_i32_0 = arith.constant 0 : i32
    %c0_i32_1 = arith.constant 0 : i32
    return %c0_i32, %c0_i32_0 : i32, i32
  }
  func.func @transform_7(%arg0: i32, %arg1: i32) -> (i32, i32, i32) {
    %c0_i32 = arith.constant 0 : i32
    %c0_i32_0 = arith.constant 0 : i32
    return %arg0, %c0_i32, %arg1 : i32, i32, i32
  }
}

</mosaic_0001>

<llo_original>
// kernel: tpu_custom_call.1
$region0: #{tpu_custom_call.1}
  #allocation0 [shape = 'u32[]', space=smem, size = 0x4, offset = 0x4, fixed_abs, tag = 'smem constant byte address 0x4 - core index']
  #allocation1 [shape = 'u32[144,128]{1,0:T(1,128)}', space=vmem, size = 0x12000, scoped, tag = 'internal scratch']
  %s0 = inlined_call_operand.vmem [shape: f32[2,16,256], index: 0, kind: input, shape index: {}]
  %s1 = inlined_call_operand.vmem [shape: f32[8,16], index: 1, kind: input, shape index: {}]
  %s2 = inlined_call_operand.vmem [shape: f32[8,1], index: 2, kind: input, shape index: {}]
  %s3 = inlined_call_operand.vmem [shape: f32[4,8], index: 3, kind: input, shape index: {}]
  %s4 = inlined_call_operand.vmem [shape: f32[4,1], index: 4, kind: input, shape index: {}]
  %s5 = inlined_call_operand.vmem [shape: f32[128,4], index: 5, kind: input, shape index: {}]
  %s6 = inlined_call_operand.vmem [shape: f32[128,1], index: 6, kind: input, shape index: {}]
  %s7 = inlined_call_operand.hbm [shape: f32[2,128,256], index: 7, kind: output, shape index: {}]
  %s8 = sld [smem:[#allocation0]]
  $region61: #{tpu_custom_call.1} parent=0
    _
  %s10 = ssub.s32 1, %s8
  %s11 = scalar_select 0, %s10, %s8
  $region1: #{tpu_custom_call.1} parent=0
    #allocation2 [shape = 'u8[262144]{0}', space=vmem, size = 0x40000, scoped, tag = 'output window, operand 0']
    #allocation3 [shape = 's32[2]{0}', space=sflag, size = 0x8, scoped, tag = 'scoped memory for tpu_custom_call.1']
    %12 = vsyncpa [#allocation3], 0
    %s13 = scalar_lea.sflag [#allocation3], 1
    %14 = vsyncpa %s13, 0
    loop: start=0, step=1, limit=4
    $region2: #{tpu_custom_call.1} parent=1 // loop_pre_header
      _
    $region3: #{tpu_custom_call.1} parent=1 // loop_header
      %s16 = sphi 0, %s20
      %p17 = scmp.ge.s32.totalorder %s16, 4
      %s23 = sphi 0, %s35
      %s24 = sphi 0, %s31
      %s25 = sphi 0, %s23
      %s26 = sphi 0, %s24
      %s27 = sphi 0, %s25
      %s28 = sphi 0, %s26
      %s40 = sphi 0, %s42
      %s43 = sphi 0, %s40
      %s44 = sphi 0, %s43
      %s60 = sphi 0, %s44
      %s64 = sphi 0, %s64
      %s66 = sphi 0, %s64
      %s67 = sphi 0, %s66
      %s81 = sphi 0, %s67
      %s85 = sphi 0, %s85
      %s87 = sphi 0, %s85
      %s88 = sphi 0, %s87
      %s102 = sphi 0, %s88
      %s106 = sphi 0, %s106
      %s108 = sphi 0, %s106
      %s109 = sphi 0, %s108
      %s123 = sphi 0, %s109
      %s127 = sphi 0, %s127
      %s129 = sphi 0, %s127
      %s130 = sphi 0, %s129
      %s144 = sphi 0, %s130
      %s148 = sphi 0, %s148
      %s150 = sphi 0, %s148
      %s151 = sphi 0, %s150
      %s165 = sphi 0, %s151
      %s169 = sphi 0, %s169
      %s171 = sphi 0, %s169
      %s172 = sphi 0, %s171
      %s186 = sphi 0, %s172
      %s194 = sphi 0, %s196
      %s197 = sphi 0, %s194
      %s198 = sphi 0, %s197
      %s214 = sphi 0, %s198
    $region4: #{tpu_custom_call.1} parent=1 // loop_header_branch
      %19 = sbr.rel (%p17) target = $region8
    $region5: #{tpu_custom_call.1} parent=1 // loop_body
      %s21 = ssub.s32 %s16, 1
      %s22 = ssub.s32 %s16, 2
      %s29 = sadd.s32 1, %s24
      %p30 = scmp.ge.s32.totalorder %s29, 1
      %s31 = scalar_select %p30, 0, %s29
      %s32 = sadd.s32 1, %s23
      %s33 = scalar_select %p30, %s32, %s23
      %p34 = scmp.ge.s32.totalorder %s33, 2
      %s35 = scalar_select %p34, 0, %s33
      %s36 = ssub.s32 %s23, %s35
      %s37 = ssub.s32 %s24, %s31
      %s38 = sor.u32 %s36, %s37
      %p39 = scmp.eq.s32.totalorder %s38, 0
      %s41 = sadd.s32 %s40, 1
      %s42 = scalar_select %p39, %s40, %s41
      %p45 = pneg %p39
      %p46 = scmp.eq.s32.totalorder %s16, 1
      %p47 = por %p45, %p46
      %p48 = scmp.ne.s32.totalorder %s40, %s43
      %p49 = scmp.eq.s32.totalorder %s16, 0
      %p50 = por %p48, %p49
      %p51 = scmp.ne.s32.totalorder %s40, %s43
      %p52 = scmp.eq.s32.totalorder %s21, 1
      %p53 = por %p51, %p52
      %p54 = scmp.ne.s32.totalorder %s43, %s44
      %p55 = scmp.eq.s32.totalorder %s21, 0
      %p56 = por %p54, %p55
      %p57 = scmp.ne.s32.totalorder %s43, %s44
      %p58 = scmp.eq.s32.totalorder %s22, 1
      %p59 = por %p57, %p58
      %p61 = scmp.ne.s32.totalorder %s44, %s60
      %p62 = scmp.eq.s32.totalorder %s22, 0
      %p63 = por %p61, %p62
      %s65 = sadd.s32 %s64, 1
      %p68 = scmp.eq.s32.totalorder %s16, 1
      %p69 = scmp.ne.s32.totalorder %s64, %s66
      %p70 = scmp.eq.s32.totalorder %s16, 0
      %p71 = por %p69, %p70
      %p72 = scmp.ne.s32.totalorder %s64, %s66
      %p73 = scmp.eq.s32.totalorder %s21, 1
      %p74 = por %p72, %p73
      %p75 = scmp.ne.s32.totalorder %s66, %s67
      %p76 = scmp.eq.s32.totalorder %s21, 0
      %p77 = por %p75, %p76
      %p78 = scmp.ne.s32.totalorder %s66, %s67
      %p79 = scmp.eq.s32.totalorder %s22, 1
      %p80 = por %p78, %p79
      %p82 = scmp.ne.s32.totalorder %s67, %s81
      %p83 = scmp.eq.s32.totalorder %s22, 0
      %p84 = por %p82, %p83
      %s86 = sadd.s32 %s85, 1
      %p89 = scmp.eq.s32.totalorder %s16, 1
      %p90 = scmp.ne.s32.totalorder %s85, %s87
      %p91 = scmp.eq.s32.totalorder %s16, 0
      %p92 = por %p90, %p91
      %p93 = scmp.ne.s32.totalorder %s85, %s87
      %p94 = scmp.eq.s32.totalorder %s21, 1
      %p95 = por %p93, %p94
      %p96 = scmp.ne.s32.totalorder %s87, %s88
      %p97 = scmp.eq.s32.totalorder %s21, 0
      %p98 = por %p96, %p97
      %p99 = scmp.ne.s32.totalorder %s87, %s88
      %p100 = scmp.eq.s32.totalorder %s22, 1
      %p101 = por %p99, %p100
      %p103 = scmp.ne.s32.totalorder %s88, %s102
      %p104 = scmp.eq.s32.totalorder %s22, 0
      %p105 = por %p103, %p104
      %s107 = sadd.s32 %s106, 1
      %p110 = scmp.eq.s32.totalorder %s16, 1
      %p111 = scmp.ne.s32.totalorder %s106, %s108
      %p112 = scmp.eq.s32.totalorder %s16, 0
      %p113 = por %p111, %p112
      %p114 = scmp.ne.s32.totalorder %s106, %s108
      %p115 = scmp.eq.s32.totalorder %s21, 1
      %p116 = por %p114, %p115
      %p117 = scmp.ne.s32.totalorder %s108, %s109
      %p118 = scmp.eq.s32.totalorder %s21, 0
      %p119 = por %p117, %p118
      %p120 = scmp.ne.s32.totalorder %s108, %s109
      %p121 = scmp.eq.s32.totalorder %s22, 1
      %p122 = por %p120, %p121
      %p124 = scmp.ne.s32.totalorder %s109, %s123
      %p125 = scmp.eq.s32.totalorder %s22, 0
      %p126 = por %p124, %p125
      %s128 = sadd.s32 %s127, 1
      %p131 = scmp.eq.s32.totalorder %s16, 1
      %p132 = scmp.ne.s32.totalorder %s127, %s129
      %p133 = scmp.eq.s32.totalorder %s16, 0
      %p134 = por %p132, %p133
      %p135 = scmp.ne.s32.totalorder %s127, %s129
      %p136 = scmp.eq.s32.totalorder %s21, 1
      %p137 = por %p135, %p136
      %p138 = scmp.ne.s32.totalorder %s129, %s130
      %p139 = scmp.eq.s32.totalorder %s21, 0
      %p140 = por %p138, %p139
      %p141 = scmp.ne.s32.totalorder %s129, %s130
      %p142 = scmp.eq.s32.totalorder %s22, 1
      %p143 = por %p141, %p142
      %p145 = scmp.ne.s32.totalorder %s130, %s144
      %p146 = scmp.eq.s32.totalorder %s22, 0
      %p147 = por %p145, %p146
      %s149 = sadd.s32 %s148, 1
      %p152 = scmp.eq.s32.totalorder %s16, 1
      %p153 = scmp.ne.s32.totalorder %s148, %s150
      %p154 = scmp.eq.s32.totalorder %s16, 0
      %p155 = por %p153, %p154
      %p156 = scmp.ne.s32.totalorder %s148, %s150
      %p157 = scmp.eq.s32.totalorder %s21, 1
      %p158 = por %p156, %p157
      %p159 = scmp.ne.s32.totalorder %s150, %s151
      %p160 = scmp.eq.s32.totalorder %s21, 0
      %p161 = por %p159, %p160
      %p162 = scmp.ne.s32.totalorder %s150, %s151
      %p163 = scmp.eq.s32.totalorder %s22, 1
      %p164 = por %p162, %p163
      %p166 = scmp.ne.s32.totalorder %s151, %s165
      %p167 = scmp.eq.s32.totalorder %s22, 0
      %p168 = por %p166, %p167
      %s170 = sadd.s32 %s169, 1
      %p173 = scmp.eq.s32.totalorder %s16, 1
      %p174 = scmp.ne.s32.totalorder %s169, %s171
      %p175 = scmp.eq.s32.totalorder %s16, 0
      %p176 = por %p174, %p175
      %p177 = scmp.ne.s32.totalorder %s169, %s171
      %p178 = scmp.eq.s32.totalorder %s21, 1
      %p179 = por %p177, %p178
      %p180 = scmp.ne.s32.totalorder %s171, %s172
      %p181 = scmp.eq.s32.totalorder %s21, 0
      %p182 = por %p180, %p181
      %p183 = scmp.ne.s32.totalorder %s171, %s172
      %p184 = scmp.eq.s32.totalorder %s22, 1
      %p185 = por %p183, %p184
      %p187 = scmp.ne.s32.totalorder %s172, %s186
      %p188 = scmp.eq.s32.totalorder %s22, 0
      %p189 = por %p187, %p188
      %s190 = ssub.s32 %s23, %s35
      %s191 = ssub.s32 %s24, %s31
      %s192 = sor.u32 %s190, %s191
      %p193 = scmp.eq.s32.totalorder %s192, 0
      %s195 = sadd.s32 %s194, 1
      %s196 = scalar_select %p193, %s194, %s195
      %p199 = pneg %p193
      %p200 = scmp.eq.s32.totalorder %s16, 1
      %p201 = por %p199, %p200
      %p202 = scmp.ne.s32.totalorder %s194, %s197
      %p203 = scmp.eq.s32.totalorder %s16, 0
      %p204 = por %p202, %p203
      %p205 = scmp.ne.s32.totalorder %s194, %s197
      %p206 = scmp.eq.s32.totalorder %s21, 1
      %p207 = por %p205, %p206
      %p208 = scmp.ne.s32.totalorder %s197, %s198
      %p209 = scmp.eq.s32.totalorder %s21, 0
      %p210 = por %p208, %p209
      %p211 = scmp.ne.s32.totalorder %s197, %s198
      %p212 = scmp.eq.s32.totalorder %s22, 1
      %p213 = por %p211, %p212
      %p215 = scmp.ne.s32.totalorder %s198, %s214
      %p216 = scmp.eq.s32.totalorder %s22, 0
      %p217 = por %p215, %p216
      %p218 = scmp.le.s32.totalorder 1, %s16
      %p219 = scmp.lt.s32.totalorder %s16, 3
      %p220 = pnand %p218, %p219
      %p221 = pneg %p220
      // Predicated region
      $region9: #{tpu_custom_call.1} parent=5 // pred_check
        _
      $region10: #{tpu_custom_call.1} parent=5 // pred_check_branch
        %223 = sbr.rel (%p220) target = $region12
      $region11: #{tpu_custom_call.1} parent=5 // pred_region
        %s224 = ssub.s32 %s16, 1
        // Predicated region
        $region13: #{tpu_custom_call.1} parent=11 // pred_check
          %p225 = pneg %p77
        $region14: #{tpu_custom_call.1} parent=11 // pred_check_branch
          %227 = sbr.rel (%p225) target = $region16
        $region15: #{tpu_custom_call.1} parent=11 // pred_region
          _
        $region16: #{tpu_custom_call.1} parent=11 // pred_fallthru
          _
        // Predicated region
        $region17: #{tpu_custom_call.1} parent=11 // pred_check
          %p228 = pneg %p98
        $region18: #{tpu_custom_call.1} parent=11 // pred_check_branch
          %230 = sbr.rel (%p228) target = $region20
        $region19: #{tpu_custom_call.1} parent=11 // pred_region
          _
        $region20: #{tpu_custom_call.1} parent=11 // pred_fallthru
          _
        // Predicated region
        $region21: #{tpu_custom_call.1} parent=11 // pred_check
          %p231 = pneg %p119
        $region22: #{tpu_custom_call.1} parent=11 // pred_check_branch
          %233 = sbr.rel (%p231) target = $region24
        $region23: #{tpu_custom_call.1} parent=11 // pred_region
          _
        $region24: #{tpu_custom_call.1} parent=11 // pred_fallthru
          _
        // Predicated region
        $region25: #{tpu_custom_call.1} parent=11 // pred_check
          %p234 = pneg %p140
        $region26: #{tpu_custom_call.1} parent=11 // pred_check_branch
          %236 = sbr.rel (%p234) target = $region28
        $region27: #{tpu_custom_call.1} parent=11 // pred_region
          _
        $region28: #{tpu_custom_call.1} parent=11 // pred_fallthru
          _
        // Predicated region
        $region29: #{tpu_custom_call.1} parent=11 // pred_check
          %p237 = pneg %p161
        $region30: #{tpu_custom_call.1} parent=11 // pred_check_branch
          %239 = sbr.rel (%p237) target = $region32
        $region31: #{tpu_custom_call.1} parent=11 // pred_region
          _
        $region32: #{tpu_custom_call.1} parent=11 // pred_fallthru
          _
        // Predicated region
        $region33: #{tpu_custom_call.1} parent=11 // pred_check
          %p240 = pneg %p182
        $region34: #{tpu_custom_call.1} parent=11 // pred_check_branch
          %242 = sbr.rel (%p240) target = $region36
        $region35: #{tpu_custom_call.1} parent=11 // pred_region
          _
        $region36: #{tpu_custom_call.1} parent=11 // pred_fallthru
          _
      $region12: #{tpu_custom_call.1} parent=5 // pred_fallthru
        _
      %p243 = scmp.lt.s32.totalorder %s16, 2
      // Predicated region
      $region37: #{tpu_custom_call.1} parent=5 // pred_check
        %p244 = pneg %p243
      $region38: #{tpu_custom_call.1} parent=5 // pred_check_branch
        %246 = sbr.rel (%p244) target = $region40
      $region39: #{tpu_custom_call.1} parent=5 // pred_region
        // Predicated region
        $region41: #{tpu_custom_call.1} parent=39 // pred_check
          %p247 = pneg %p50
        $region42: #{tpu_custom_call.1} parent=39 // pred_check_branch
          %249 = sbr.rel (%p247) target = $region44
        $region43: #{tpu_custom_call.1} parent=39 // pred_region
          %s250 = smul.u32 2, %s24
          %p251 = scmp.lt.s32.totalorder %s23, 1
          %s252 = scalar_select %p251, %s23, 1
          %p253 = scmp.lt.s32.totalorder %s250, 1
          %s254 = scalar_select %p253, %s250, 1
          %s255 = smul.addr %s252, 4
          %s256 = sadd.s32 %s254, %s255
          %s257 = smul.addr %s256, 8
          %s258 = scalar_lea.vmem %s0, %s257
          %s259 = smul.u32 2, %s24
        $region44: #{tpu_custom_call.1} parent=39 // pred_fallthru
          _
      $region40: #{tpu_custom_call.1} parent=5 // pred_fallthru
        _
      %p260 = scmp.le.s32.totalorder 1, %s16
      %p261 = scmp.lt.s32.totalorder %s16, 3
      %p262 = pnand %p260, %p261
      %p263 = pneg %p262
      // Predicated region
      $region45: #{tpu_custom_call.1} parent=5 // pred_check
        _
      $region46: #{tpu_custom_call.1} parent=5 // pred_check_branch
        %265 = sbr.rel (%p262) target = $region48
      $region47: #{tpu_custom_call.1} parent=5 // pred_region
        %s266 = ssub.s32 %s16, 1
        %s267 = smul.u32 2, %s26
        %p268 = scmp.lt.s32.totalorder %s25, 1
        %s269 = scalar_select %p268, %s25, 1
        %p270 = scmp.lt.s32.totalorder %s267, 1
        %s271 = scalar_select %p270, %s267, 1
        %s272 = smul.addr %s269, 4
        %s273 = sadd.s32 %s271, %s272
        %s274 = smul.addr %s273, 8
        %s275 = scalar_lea.vmem %s0, %s274
        %p276 = pneg %p56
        %p277 = pneg %p53
        %p278 = pneg %p77
        %p279 = pneg %p74
        %p280 = pneg %p98
        %p281 = pneg %p95
        %p282 = pneg %p119
        %p283 = pneg %p116
        %p284 = pneg %p140
        %p285 = pneg %p137
        %p286 = pneg %p161
        %p287 = pneg %p158
        %p288 = pneg %p182
        %p289 = pneg %p179
        %p290 = pneg %p210
        %p291 = pneg %p207
        %s292 = sand.u32 %s197, 1
        %s293 = scalar_lea.sflag [#allocation3], %s292
        %s294 = sand.u32 %s197, 1
        %s295 = smul.addr %s294, 256
        %s296 = scalar_lea.vmem [#allocation2], %s295
        %s297 = smul.u32 2, %s26
        %p298 = scmp.lt.s32.totalorder %s25, 1
        %s299 = scalar_select %p298, %s25, 1
        %p300 = scmp.lt.s32.totalorder %s297, 1
        %s301 = scalar_select %p300, %s297, 1
        %s302 = smul.addr %s299, 4
        %s303 = sadd.s32 %s301, %s302
        %s304 = smul.addr %s303, 8
        %s305 = scalar_lea.vmem %s0, %s304
        %s306 = smul.u32 2, %s26
        %s307 = smul.u32 2, %s26
        %v308 = vld [vmem:[%s1] sm:$0xff]
        %v309 = vld [vmem:[%s3] sm:$0xf]
        %v310 = vld [vmem:[%s5] sm:$0xff]
        %v311 = vld [vmem:[%s5 + $0x8] sm:$0xff]
        %v312 = vld [vmem:[%s5 + $0x10] sm:$0xff]
        %v313 = vld [vmem:[%s5 + $0x18] sm:$0xff]
        %v314 = vld [vmem:[%s5 + $0x20] sm:$0xff]
        %v315 = vld [vmem:[%s5 + $0x28] sm:$0xff]
        %v316 = vld [vmem:[%s5 + $0x30] sm:$0xff]
        %v317 = vld [vmem:[%s5 + $0x38] sm:$0xff]
        %v318 = vld [vmem:[%s5 + $0x40] sm:$0xff]
        %v319 = vld [vmem:[%s5 + $0x48] sm:$0xff]
        %v320 = vld [vmem:[%s5 + $0x50] sm:$0xff]
        %v321 = vld [vmem:[%s5 + $0x58] sm:$0xff]
        %v322 = vld [vmem:[%s5 + $0x60] sm:$0xff]
        %v323 = vld [vmem:[%s5 + $0x68] sm:$0xff]
        %v324 = vld [vmem:[%s5 + $0x70] sm:$0xff]
        %v325 = vld [vmem:[%s5 + $0x78] sm:$0xff]
        %v326 = vld [vmem:[%s2] sm:$0xff]
        %v327 = vld [vmem:[%s4] sm:$0xf]
        %v328 = vld [vmem:[%s6] sm:$0xff]
        %v329 = vld [vmem:[%s6 + $0x8] sm:$0xff]
        %v330 = vld [vmem:[%s6 + $0x10] sm:$0xff]
        %v331 = vld [vmem:[%s6 + $0x18] sm:$0xff]
        %v332 = vld [vmem:[%s6 + $0x20] sm:$0xff]
        %v333 = vld [vmem:[%s6 + $0x28] sm:$0xff]
        %v334 = vld [vmem:[%s6 + $0x30] sm:$0xff]
        %v335 = vld [vmem:[%s6 + $0x38] sm:$0xff]
        %v336 = vld [vmem:[%s6 + $0x40] sm:$0xff]
        %v337 = vld [vmem:[%s6 + $0x48] sm:$0xff]
        %v338 = vld [vmem:[%s6 + $0x50] sm:$0xff]
        %v339 = vld [vmem:[%s6 + $0x58] sm:$0xff]
        %v340 = vld [vmem:[%s6 + $0x60] sm:$0xff]
        %v341 = vld [vmem:[%s6 + $0x68] sm:$0xff]
        %v342 = vld [vmem:[%s6 + $0x70] sm:$0xff]
        %v343 = vld [vmem:[%s6 + $0x78] sm:$0xff]
        %v344 = vld [vmem:[%s305] sm:$0xff]
        %v345 = vld [vmem:[%s305 + $0x8] sm:$0xff]
        %v346 = vld [vmem:[%s305 + $0x10] sm:$0xff]
        %v347 = vld [vmem:[%s305 + $0x18] sm:$0xff]
        %349 = vset.pattern.permute.xlu0 0
        %350 = vperm.xlu0 %349, %v326
        %v351 = vpop.permute.xlu0 %350
        %vm353 = vcmask 130048
        %v355 = vsel %vm353, %v308, 0
        %357 = vmatprep.subr.mxu0 %v345
        %358 = vmatpush1.msra.mxu0 %v344
        %359 = vmatprep.subr.mxu0 %v347
        %360 = vmatpush1.msra.mxu0 %v346
        %361 = vmatprep.subr.mxu0 0.0
        %362 = vmatpush1.msra.mxu0 0.0
        %363 = vmatprep.subr.mxu0 0.0
        %364 = vmatpush1.msra.mxu0 0.0
        %365 = vmatprep.subr.mxu0 0.0
        %366 = vmatpush1.msra.mxu0 0.0
        %367 = vmatprep.subr.mxu0 0.0
        %368 = vmatpush1.msra.mxu0 0.0
        %369 = vmatprep.subr.mxu0 0.0
        %370 = vmatpush1.msra.mxu0 0.0
        %371 = vmatprep.subr.mxu0 0.0
        %372 = vmatpush1.msra.mxu0 0.0
        %373 = vmatprep.subr.mxu0 0.0
        %374 = vmatpush1.msra.mxu0 0.0
        %375 = vmatprep.subr.mxu0 0.0
        %376 = vmatpush1.msra.mxu0 0.0
        %377 = vmatprep.subr.mxu0 0.0
        %378 = vmatpush1.msra.mxu0 0.0
        %379 = vmatprep.subr.mxu0 0.0
        %380 = vmatpush1.msra.mxu0 0.0
        %381 = vmatprep.subr.mxu0 0.0
        %382 = vmatpush1.msra.mxu0 0.0
        %383 = vmatprep.subr.mxu0 0.0
        %384 = vmatpush1.msra.mxu0 0.0
        %385 = vmatprep.subr.mxu0 0.0
        %386 = vmatpush1.msra.mxu0 0.0
        %387 = vmatprep.subr.mxu0 0.0
        %388 = vmatpush1.msra.mxu0 0.0
        %389 = vmatprep.subr.mxu0 0.0
        %390 = vmatpush1.msra.mxu0 0.0
        %391 = vmatprep.subr.mxu0 0.0
        %392 = vmatpush1.msra.mxu0 0.0
        %393 = vmatprep.subr.mxu0 0.0
        %394 = vmatpush1.msra.mxu0 0.0
        %395 = vmatprep.subr.mxu0 0.0
        %396 = vmatpush1.msra.mxu0 0.0
        %397 = vmatprep.subr.mxu0 0.0
        %398 = vmatpush1.msra.mxu0 0.0
        %399 = vmatprep.subr.mxu0 0.0
        %400 = vmatpush1.msra.mxu0 0.0
        %401 = vmatprep.subr.mxu0 0.0
        %402 = vmatpush1.msra.mxu0 0.0
        %403 = vmatprep.subr.mxu0 0.0
        %404 = vmatpush1.msra.mxu0 0.0
        %405 = vmatprep.subr.mxu0 0.0
        %406 = vmatpush1.msra.mxu0 0.0
        %407 = vmatprep.subr.mxu0 0.0
        %408 = vmatpush1.msra.mxu0 0.0
        %409 = vmatprep.subr.mxu0 0.0
        %410 = vmatpush1.msra.mxu0 0.0
        %411 = vmatprep.subr.mxu0 0.0
        %412 = vmatpush1.msra.mxu0 0.0
        %413 = vmatprep.subr.mxu0 0.0
        %414 = vmatpush1.msra.mxu0 0.0
        %415 = vmatprep.subr.mxu0 0.0
        %416 = vmatpush1.msra.mxu0 0.0
        %417 = vmatprep.subr.mxu0 0.0
        %418 = vmatpush1.msra.mxu0 0.0
        %419 = vmatprep.subr.mxu0 0.0
        %420 = vmatpush1.msra.mxu0 0.0
        %421 = vmatprep.mubr.f32.mxu0 0.0
        %422 = vmatmul.mubr.f32.gmra.mrb[0].mxu0 %v355
        %v423 = vpop.f32.mrb[0].mxu0
        %v424 = vadd.f32 %v351, %v423
        %v425 = vpop.f32.mrb[0].mxu0
        %v426 = vadd.f32 %v351, %v425
        %427 = vdwg.mxu0
        %v428 = vxor.u32 %v424, 2147483648
        %v429 = vxor.u32 %v426, 2147483648
        %v430 = vmul.f32 %v428, 1.442695
        %v431 = vpow.pop %v430
        %v432 = vmul.f32 %v429, 1.442695
        %v433 = vpow.pop %v432
        %v434 = vadd.f32 %v431, 1.0
        %v435 = vadd.f32 %v433, 1.0
        %v436 = vrcp.pop %v434
        %v437 = vmul.f32 1.0, %v436
        %v438 = vrcp.pop %v435
        %v439 = vmul.f32 1.0, %v438
        %v440 = vmul.f32 %v424, %v437
        %v441 = vmul.f32 %v426, %v439
        %443 = vset.pattern.permute.xlu0 0
        %444 = vperm.xlu0 %443, %v327
        %v445 = vpop.permute.xlu0 %444
        %vm447 = vcmask 64512
        %v449 = vsel %vm447, %v309, 0
        %451 = vmatprep.subr.mxu0 %v441
        %452 = vmatpush1.msra.mxu0 %v440
        %453 = vmatprep.subr.mxu0 0.0
        %454 = vmatpush1.msra.mxu0 0.0
        %455 = vmatprep.subr.mxu0 0.0
        %456 = vmatpush1.msra.mxu0 0.0
        %457 = vmatprep.subr.mxu0 0.0
        %458 = vmatpush1.msra.mxu0 0.0
        %459 = vmatprep.subr.mxu0 0.0
        %460 = vmatpush1.msra.mxu0 0.0
        %461 = vmatprep.subr.mxu0 0.0
        %462 = vmatpush1.msra.mxu0 0.0
        %463 = vmatprep.subr.mxu0 0.0
        %464 = vmatpush1.msra.mxu0 0.0
        %465 = vmatprep.subr.mxu0 0.0
        %466 = vmatpush1.msra.mxu0 0.0
        %467 = vmatprep.subr.mxu0 0.0
        %468 = vmatpush1.msra.mxu0 0.0
        %469 = vmatprep.subr.mxu0 0.0
        %470 = vmatpush1.msra.mxu0 0.0
        %471 = vmatprep.subr.mxu0 0.0
        %472 = vmatpush1.msra.mxu0 0.0
        %473 = vmatprep.subr.mxu0 0.0
        %474 = vmatpush1.msra.mxu0 0.0
        %475 = vmatprep.subr.mxu0 0.0
        %476 = vmatpush1.msra.mxu0 0.0
        %477 = vmatprep.subr.mxu0 0.0
        %478 = vmatpush1.msra.mxu0 0.0
        %479 = vmatprep.subr.mxu0 0.0
        %480 = vmatpush1.msra.mxu0 0.0
        %481 = vmatprep.subr.mxu0 0.0
        %482 = vmatpush1.msra.mxu0 0.0
        %483 = vmatprep.subr.mxu0 0.0
        %484 = vmatpush1.msra.mxu0 0.0
        %485 = vmatprep.subr.mxu0 0.0
        %486 = vmatpush1.msra.mxu0 0.0
        %487 = vmatprep.subr.mxu0 0.0
        %488 = vmatpush1.msra.mxu0 0.0
        %489 = vmatprep.subr.mxu0 0.0
        %490 = vmatpush1.msra.mxu0 0.0
        %491 = vmatprep.subr.mxu0 0.0
        %492 = vmatpush1.msra.mxu0 0.0
        %493 = vmatprep.subr.mxu0 0.0
        %494 = vmatpush1.msra.mxu0 0.0
        %495 = vmatprep.subr.mxu0 0.0
        %496 = vmatpush1.msra.mxu0 0.0
        %497 = vmatprep.subr.mxu0 0.0
        %498 = vmatpush1.msra.mxu0 0.0
        %499 = vmatprep.subr.mxu0 0.0
        %500 = vmatpush1.msra.mxu0 0.0
        %501 = vmatprep.subr.mxu0 0.0
        %502 = vmatpush1.msra.mxu0 0.0
        %503 = vmatprep.subr.mxu0 0.0
        %504 = vmatpush1.msra.mxu0 0.0
        %505 = vmatprep.subr.mxu0 0.0
        %506 = vmatpush1.msra.mxu0 0.0
        %507 = vmatprep.subr.mxu0 0.0
        %508 = vmatpush1.msra.mxu0 0.0
        %509 = vmatprep.subr.mxu0 0.0
        %510 = vmatpush1.msra.mxu0 0.0
        %511 = vmatprep.subr.mxu0 0.0
        %512 = vmatpush1.msra.mxu0 0.0
        %513 = vmatprep.subr.mxu0 0.0
        %514 = vmatpush1.msra.mxu0 0.0
        %515 = vmatprep.mubr.f32.mxu0 0.0
        %516 = vmatmul.mubr.f32.gmra.mrb[0].mxu0 %v449
        %v517 = vpop.f32.mrb[0].mxu0
        %v518 = vadd.f32 %v445, %v517
        %v519 = vpop.f32.mrb[0].mxu0
        %v520 = vadd.f32 %v445, %v519
        %521 = vdwg.mxu0
        %v522 = vxor.u32 %v518, 2147483648
        %v523 = vxor.u32 %v520, 2147483648
        %v524 = vmul.f32 %v522, 1.442695
        %v525 = vpow.pop %v524
        %v526 = vmul.f32 %v523, 1.442695
        %v527 = vpow.pop %v526
        %v528 = vadd.f32 %v525, 1.0
        %v529 = vadd.f32 %v527, 1.0
        %v530 = vrcp.pop %v528
        %v531 = vmul.f32 1.0, %v530
        %v532 = vrcp.pop %v529
        %v533 = vmul.f32 1.0, %v532
        %v534 = vmul.f32 %v518, %v531
        %v535 = vmul.f32 %v520, %v533
        %537 = vset.pattern.permute.xlu0 0
        %538 = vperm.xlu0 %537, %v328
        %v539 = vpop.permute.xlu0 %538
        %542 = vset.pattern.permute.xlu0 0
        %543 = vperm.xlu0 %542, %v329
        %v544 = vpop.permute.xlu0 %543
        %547 = vset.pattern.permute.xlu0 0
        %548 = vperm.xlu0 %547, %v330
        %v549 = vpop.permute.xlu0 %548
        %552 = vset.pattern.permute.xlu0 0
        %553 = vperm.xlu0 %552, %v331
        %v554 = vpop.permute.xlu0 %553
        %557 = vset.pattern.permute.xlu0 0
        %558 = vperm.xlu0 %557, %v332
        %v559 = vpop.permute.xlu0 %558
        %562 = vset.pattern.permute.xlu0 0
        %563 = vperm.xlu0 %562, %v333
        %v564 = vpop.permute.xlu0 %563
        %567 = vset.pattern.permute.xlu0 0
        %568 = vperm.xlu0 %567, %v334
        %v569 = vpop.permute.xlu0 %568
        %572 = vset.pattern.permute.xlu0 0
        %573 = vperm.xlu0 %572, %v335
        %v574 = vpop.permute.xlu0 %573
        %577 = vset.pattern.permute.xlu0 0
        %578 = vperm.xlu0 %577, %v336
        %v579 = vpop.permute.xlu0 %578
        %582 = vset.pattern.permute.xlu0 0
        %583 = vperm.xlu0 %582, %v337
        %v584 = vpop.permute.xlu0 %583
        %587 = vset.pattern.permute.xlu0 0
        %588 = vperm.xlu0 %587, %v338
        %v589 = vpop.permute.xlu0 %588
        %592 = vset.pattern.permute.xlu0 0
        %593 = vperm.xlu0 %592, %v339
        %v594 = vpop.permute.xlu0 %593
        %597 = vset.pattern.permute.xlu0 0
        %598 = vperm.xlu0 %597, %v340
        %v599 = vpop.permute.xlu0 %598
        %602 = vset.pattern.permute.xlu0 0
        %603 = vperm.xlu0 %602, %v341
        %v604 = vpop.permute.xlu0 %603
        %607 = vset.pattern.permute.xlu0 0
        %608 = vperm.xlu0 %607, %v342
        %v609 = vpop.permute.xlu0 %608
        %612 = vset.pattern.permute.xlu0 0
        %613 = vperm.xlu0 %612, %v343
        %v614 = vpop.permute.xlu0 %613
        %vm616 = vcmask 31744
        %v618 = vsel %vm616, %v310, 0
        %v621 = vsel %vm616, %v311, 0
        %v624 = vsel %vm616, %v312, 0
        %v627 = vsel %vm616, %v313, 0
        %v630 = vsel %vm616, %v314, 0
        %v633 = vsel %vm616, %v315, 0
        %v636 = vsel %vm616, %v316, 0
        %v639 = vsel %vm616, %v317, 0
        %v642 = vsel %vm616, %v318, 0
        %v645 = vsel %vm616, %v319, 0
        %v648 = vsel %vm616, %v320, 0
        %v651 = vsel %vm616, %v321, 0
        %v654 = vsel %vm616, %v322, 0
        %v657 = vsel %vm616, %v323, 0
        %v660 = vsel %vm616, %v324, 0
        %v663 = vsel %vm616, %v325, 0
        %vm665 = vcmask 1043456
        %v667 = vsel %vm665, %v534, 0
        %v670 = vsel %vm665, %v535, 0
        %672 = vmatprep.subr.mxu0 %v670
        %673 = vmatpush1.msra.mxu0 %v667
        %674 = vmatprep.subr.mxu0 0.0
        %675 = vmatpush1.msra.mxu0 0.0
        %676 = vmatprep.subr.mxu0 0.0
        %677 = vmatpush1.msra.mxu0 0.0
        %678 = vmatprep.subr.mxu0 0.0
        %679 = vmatpush1.msra.mxu0 0.0
        %680 = vmatprep.subr.mxu0 0.0
        %681 = vmatpush1.msra.mxu0 0.0
        %682 = vmatprep.subr.mxu0 0.0
        %683 = vmatpush1.msra.mxu0 0.0
        %684 = vmatprep.subr.mxu0 0.0
        %685 = vmatpush1.msra.mxu0 0.0
        %686 = vmatprep.subr.mxu0 0.0
        %687 = vmatpush1.msra.mxu0 0.0
        %688 = vmatprep.subr.mxu0 0.0
        %689 = vmatpush1.msra.mxu0 0.0
        %690 = vmatprep.subr.mxu0 0.0
        %691 = vmatpush1.msra.mxu0 0.0
        %692 = vmatprep.subr.mxu0 0.0
        %693 = vmatpush1.msra.mxu0 0.0
        %694 = vmatprep.subr.mxu0 0.0
        %695 = vmatpush1.msra.mxu0 0.0
        %696 = vmatprep.subr.mxu0 0.0
        %697 = vmatpush1.msra.mxu0 0.0
        %698 = vmatprep.subr.mxu0 0.0
        %699 = vmatpush1.msra.mxu0 0.0
        %700 = vmatprep.subr.mxu0 0.0
        %701 = vmatpush1.msra.mxu0 0.0
        %702 = vmatprep.subr.mxu0 0.0
        %703 = vmatpush1.msra.mxu0 0.0
        %704 = vmatprep.subr.mxu0 0.0
        %705 = vmatpush1.msra.mxu0 0.0
        %706 = vmatprep.subr.mxu0 0.0
        %707 = vmatpush1.msra.mxu0 0.0
        %708 = vmatprep.subr.mxu0 0.0
        %709 = vmatpush1.msra.mxu0 0.0
        %710 = vmatprep.subr.mxu0 0.0
        %711 = vmatpush1.msra.mxu0 0.0
        %712 = vmatprep.subr.mxu0 0.0
        %713 = vmatpush1.msra.mxu0 0.0
        %714 = vmatprep.subr.mxu0 0.0
        %715 = vmatpush1.msra.mxu0 0.0
        %716 = vmatprep.subr.mxu0 0.0
        %717 = vmatpush1.msra.mxu0 0.0
        %718 = vmatprep.subr.mxu0 0.0
        %719 = vmatpush1.msra.mxu0 0.0
        %720 = vmatprep.subr.mxu0 0.0
        %721 = vmatpush1.msra.mxu0 0.0
        %722 = vmatprep.subr.mxu0 0.0
        %723 = vmatpush1.msra.mxu0 0.0
        %724 = vmatprep.subr.mxu0 0.0
        %725 = vmatpush1.msra.mxu0 0.0
        %726 = vmatprep.subr.mxu0 0.0
        %727 = vmatpush1.msra.mxu0 0.0
        %728 = vmatprep.subr.mxu0 0.0
        %729 = vmatpush1.msra.mxu0 0.0
        %730 = vmatprep.subr.mxu0 0.0
        %731 = vmatpush1.msra.mxu0 0.0
        %732 = vmatprep.subr.mxu0 0.0
        %733 = vmatpush1.msra.mxu0 0.0
        %734 = vmatprep.subr.mxu0 0.0
        %735 = vmatpush1.msra.mxu0 0.0
        %736 = vmatprep.mubr.f32.mxu0 0.0
        %737 = vmatmul.mubr.f32.gmra.mrb[0].mxu0 %v618
        %v738 = vpop.f32.mrb[0].mxu0
        %v739 = vadd.f32 %v539, %v738
        %v740 = vpop.f32.mrb[0].mxu0
        %v741 = vadd.f32 %v539, %v740
        %742 = vmatprep.mubr.f32.mxu0 0.0
        %743 = vmatmul.mubr.f32.gmra.mrb[0].mxu0 %v621
        %v744 = vpop.f32.mrb[0].mxu0
        %v745 = vadd.f32 %v544, %v744
        %v746 = vpop.f32.mrb[0].mxu0
        %v747 = vadd.f32 %v544, %v746
        %748 = vmatprep.mubr.f32.mxu0 0.0
        %749 = vmatmul.mubr.f32.gmra.mrb[0].mxu0 %v624
        %v750 = vpop.f32.mrb[0].mxu0
        %v751 = vadd.f32 %v549, %v750
        %v752 = vpop.f32.mrb[0].mxu0
        %v753 = vadd.f32 %v549, %v752
        %754 = vmatprep.mubr.f32.mxu0 0.0
        %755 = vmatmul.mubr.f32.gmra.mrb[0].mxu0 %v627
        %v756 = vpop.f32.mrb[0].mxu0
        %v757 = vadd.f32 %v554, %v756
        %v758 = vpop.f32.mrb[0].mxu0
        %v759 = vadd.f32 %v554, %v758
        %760 = vmatprep.mubr.f32.mxu0 0.0
        %761 = vmatmul.mubr.f32.gmra.mrb[0].mxu0 %v630
        %v762 = vpop.f32.mrb[0].mxu0
        %v763 = vadd.f32 %v559, %v762
        %v764 = vpop.f32.mrb[0].mxu0
        %v765 = vadd.f32 %v559, %v764
        %766 = vmatprep.mubr.f32.mxu0 0.0
        %767 = vmatmul.mubr.f32.gmra.mrb[0].mxu0 %v633
        %v768 = vpop.f32.mrb[0].mxu0
        %v769 = vadd.f32 %v564, %v768
        %v770 = vpop.f32.mrb[0].mxu0
        %v771 = vadd.f32 %v564, %v770
        %772 = vmatprep.mubr.f32.mxu0 0.0
        %773 = vmatmul.mubr.f32.gmra.mrb[0].mxu0 %v636
        %v774 = vpop.f32.mrb[0].mxu0
        %v775 = vadd.f32 %v569, %v774
        %v776 = vpop.f32.mrb[0].mxu0
        %v777 = vadd.f32 %v569, %v776
        %778 = vmatprep.mubr.f32.mxu0 0.0
        %779 = vmatmul.mubr.f32.gmra.mrb[0].mxu0 %v639
        %v780 = vpop.f32.mrb[0].mxu0
        %v781 = vadd.f32 %v574, %v780
        %v782 = vpop.f32.mrb[0].mxu0
        %v783 = vadd.f32 %v574, %v782
        %784 = vmatprep.mubr.f32.mxu0 0.0
        %785 = vmatmul.mubr.f32.gmra.mrb[0].mxu0 %v642
        %v786 = vpop.f32.mrb[0].mxu0
        %v787 = vadd.f32 %v579, %v786
        %v788 = vpop.f32.mrb[0].mxu0
        %v789 = vadd.f32 %v579, %v788
        %790 = vmatprep.mubr.f32.mxu0 0.0
        %791 = vmatmul.mubr.f32.gmra.mrb[0].mxu0 %v645
        %v792 = vpop.f32.mrb[0].mxu0
        %v793 = vadd.f32 %v584, %v792
        %v794 = vpop.f32.mrb[0].mxu0
        %v795 = vadd.f32 %v584, %v794
        %796 = vmatprep.mubr.f32.mxu0 0.0
        %797 = vmatmul.mubr.f32.gmra.mrb[0].mxu0 %v648
        %v798 = vpop.f32.mrb[0].mxu0
        %v799 = vadd.f32 %v589, %v798
        %v800 = vpop.f32.mrb[0].mxu0
        %v801 = vadd.f32 %v589, %v800
        %802 = vmatprep.mubr.f32.mxu0 0.0
        %803 = vmatmul.mubr.f32.gmra.mrb[0].mxu0 %v651
        %v804 = vpop.f32.mrb[0].mxu0
        %v805 = vadd.f32 %v594, %v804
        %v806 = vpop.f32.mrb[0].mxu0
        %v807 = vadd.f32 %v594, %v806
        %808 = vmatprep.mubr.f32.mxu0 0.0
        %809 = vmatmul.mubr.f32.gmra.mrb[0].mxu0 %v654
        %v810 = vpop.f32.mrb[0].mxu0
        %v811 = vadd.f32 %v599, %v810
        %v812 = vpop.f32.mrb[0].mxu0
        %v813 = vadd.f32 %v599, %v812
        %814 = vmatprep.mubr.f32.mxu0 0.0
        %815 = vmatmul.mubr.f32.gmra.mrb[0].mxu0 %v657
        %v816 = vpop.f32.mrb[0].mxu0
        %v817 = vadd.f32 %v604, %v816
        %v818 = vpop.f32.mrb[0].mxu0
        %v819 = vadd.f32 %v604, %v818
        %820 = vmatprep.mubr.f32.mxu0 0.0
        %821 = vmatmul.mubr.f32.gmra.mrb[0].mxu0 %v660
        %v822 = vpop.f32.mrb[0].mxu0
        %v823 = vadd.f32 %v609, %v822
        %v824 = vpop.f32.mrb[0].mxu0
        %v825 = vadd.f32 %v609, %v824
        %826 = vmatprep.mubr.f32.mxu0 0.0
        %827 = vmatmul.mubr.f32.gmra.mrb[0].mxu0 %v663
        %v828 = vpop.f32.mrb[0].mxu0
        %v829 = vadd.f32 %v614, %v828
        %v830 = vpop.f32.mrb[0].mxu0
        %v831 = vadd.f32 %v614, %v830
        %832 = vdwg.mxu0
        %833 = vst [vmem:[%s296] sm:$0xff] %v739
        %834 = vst [vmem:[%s296 + $0x8] sm:$0xff] %v741
        %835 = vst [vmem:[%s296 + $0x10] sm:$0xff] %v745
        %836 = vst [vmem:[%s296 + $0x18] sm:$0xff] %v747
        %837 = vst [vmem:[%s296 + $0x20] sm:$0xff] %v751
        %838 = vst [vmem:[%s296 + $0x28] sm:$0xff] %v753
        %839 = vst [vmem:[%s296 + $0x30] sm:$0xff] %v757
        %840 = vst [vmem:[%s296 + $0x38] sm:$0xff] %v759
        %841 = vst [vmem:[%s296 + $0x40] sm:$0xff] %v763
        %842 = vst [vmem:[%s296 + $0x48] sm:$0xff] %v765
        %843 = vst [vmem:[%s296 + $0x50] sm:$0xff] %v769
        %844 = vst [vmem:[%s296 + $0x58] sm:$0xff] %v771
        %845 = vst [vmem:[%s296 + $0x60] sm:$0xff] %v775
        %846 = vst [vmem:[%s296 + $0x68] sm:$0xff] %v777
        %847 = vst [vmem:[%s296 + $0x70] sm:$0xff] %v781
        %848 = vst [vmem:[%s296 + $0x78] sm:$0xff] %v783
        %849 = vst [vmem:[%s296 + $0x80] sm:$0xff] %v787
        %850 = vst [vmem:[%s296 + $0x88] sm:$0xff] %v789
        %851 = vst [vmem:[%s296 + $0x90] sm:$0xff] %v793
        %852 = vst [vmem:[%s296 + $0x98] sm:$0xff] %v795
        %853 = vst [vmem:[%s296 + $0xa0] sm:$0xff] %v799
        %854 = vst [vmem:[%s296 + $0xa8] sm:$0xff] %v801
        %855 = vst [vmem:[%s296 + $0xb0] sm:$0xff] %v805
        %856 = vst [vmem:[%s296 + $0xb8] sm:$0xff] %v807
        %857 = vst [vmem:[%s296 + $0xc0] sm:$0xff] %v811
        %858 = vst [vmem:[%s296 + $0xc8] sm:$0xff] %v813
        %859 = vst [vmem:[%s296 + $0xd0] sm:$0xff] %v817
        %860 = vst [vmem:[%s296 + $0xd8] sm:$0xff] %v819
        %861 = vst [vmem:[%s296 + $0xe0] sm:$0xff] %v823
        %862 = vst [vmem:[%s296 + $0xe8] sm:$0xff] %v825
        %863 = vst [vmem:[%s296 + $0xf0] sm:$0xff] %v829
        %864 = vst [vmem:[%s296 + $0xf8] sm:$0xff] %v831
        %s865 = sand.u32 %s197, 1
        %s866 = scalar_lea.sflag [#allocation3], %s865
        %s867 = sand.u32 %s197, 1
        %s868 = smul.addr %s867, 256
        %s869 = scalar_lea.vmem [#allocation2], %s868
        // Predicated region
        $region49: #{tpu_custom_call.1} parent=47 // pred_check
          %p870 = pneg %p207
        $region50: #{tpu_custom_call.1} parent=47 // pred_check_branch
          %872 = sbr.rel (%p870) target = $region52
        $region51: #{tpu_custom_call.1} parent=47 // pred_region
          %s873 = smul.u32 2, %s26
          %s875 = ssub.s32 4096, 4096
          %876 = vsyncadd %s866, %s875
          %s877 = smul.addr %s25, 32
          %s878 = sadd.s32 %s873, %s877
          %s879 = smul.addr %s878, 128
          %s880 = scalar_lea.hbm %s7, %s879
          %s881 = sshll.u32 %s869, 4
          %s882 = int_to_ptr.vmem [resolvable:$true] %s881
          %887 = dma.vmem_to_hbm [thread:$0]  %s882, 4096, %s880, %s866, 256, 256, 16
        $region52: #{tpu_custom_call.1} parent=47 // pred_fallthru
          _
      $region48: #{tpu_custom_call.1} parent=5 // pred_fallthru
        _
      %p888 = scmp.le.s32.totalorder 2, %s16
      // Predicated region
      $region53: #{tpu_custom_call.1} parent=5 // pred_check
        %p889 = pneg %p888
      $region54: #{tpu_custom_call.1} parent=5 // pred_check_branch
        %891 = sbr.rel (%p889) target = $region56
      $region55: #{tpu_custom_call.1} parent=5 // pred_region
        %s892 = ssub.s32 %s16, 2
        // Predicated region
        $region57: #{tpu_custom_call.1} parent=55 // pred_check
          %p893 = pneg %p213
        $region58: #{tpu_custom_call.1} parent=55 // pred_check_branch
          %895 = sbr.rel (%p893) target = $region60
        $region59: #{tpu_custom_call.1} parent=55 // pred_region
          %s896 = sand.u32 %s198, 1
          %s897 = scalar_lea.sflag [#allocation3], %s896
          %s898 = sand.u32 %s198, 1
          %s899 = smul.addr %s898, 256
          %s900 = scalar_lea.vmem [#allocation2], %s899
          %901 = dma.done %s897, 4096
        $region60: #{tpu_custom_call.1} parent=55 // pred_fallthru
          _
      $region56: #{tpu_custom_call.1} parent=5 // pred_fallthru
        _
    $region6: #{tpu_custom_call.1} parent=1 // loop_footer
      %s20 = sadd.s32 1, %s16
    $region7: #{tpu_custom_call.1} parent=1 // loop_footer_branch
      %15 = sbr.rel target = $region3
    $region8: #{tpu_custom_call.1} parent=1 // loop_exit
      _
    %902 = vsyncpa [#allocation3], 1
    %s903 = scalar_lea.sflag [#allocation3], 1
    %904 = vsyncpa %s903, 1

</llo_original>
